<compile_context>
chip_gen: v6e
topology: v6e:2x2x1
jax: 0.10.0
libtpu: 0.0.40
codegen_flags: <defaults>
</compile_context>

<pallas_src>
import jax
import jax.numpy as jnp
from jax.experimental import pallas as pl
from jax.experimental.pallas import tpu as pltpu

Z_DIM = 10
HIDDEN = 128
HEAD_DIMS = (3, 6, 40, 32, 32)          # shape, scale, orient, posX, posY
HEAD_TOTAL = sum(HEAD_DIMS)             # 113
HEAD_PAD = 128                          # lane-dense padded fused-head width
TILE_B_MAX = 4096                       # batch tile cap (DMA / per-step-overhead amortization)
OUT_DTYPE = jnp.bfloat16                # kernel output slab dtype (halves writeback bytes)


def _round_up(x, m):
    return (x + m - 1) // m * m


def _choose_tiling(B):
    """Pick (tile_b, b_pad). For B > 32 guarantee an even grid length >= 2 so the
    'parallel' batch axis can be sharded across both v7x TensorCores."""
    b16 = _round_up(B, 16)              # 16-row granularity (bf16 output sublane packing)
    if b16 <= 32:
        return b16, b16                 # tiny batch: 1 step; fixed cost dominates anyway
    n_steps = pl.cdiv(b16, TILE_B_MAX)
    if n_steps % 2:
        n_steps += 1                    # even step count -> balanced across 2 TCs on v7x
    n_steps = max(2, n_steps)
    tile_b = _round_up(pl.cdiv(b16, n_steps), 16)
    b_pad = _round_up(b16, tile_b)
    return tile_b, b_pad


def _latent_classifier_kernel(z_ref, w1_ref, b1_ref, w2_ref, b2_ref,
                              wh_ref, bh_ref, out_ref):
    # Layer 1: (tile_b, 10) @ (10, 128) -> f32, + bias, ReLU.
    h = jnp.dot(z_ref[...], w1_ref[...], preferred_element_type=jnp.float32)
    h = jnp.maximum(h + b1_ref[...], 0.0)
    # Layer 2: (tile_b, 128) @ (128, 128) -> f32, + bias, ReLU.
    h = jnp.dot(h, w2_ref[...], preferred_element_type=jnp.float32)
    h = jnp.maximum(h + b2_ref[...], 0.0)
    # Fused heads: (tile_b, 128) @ (128, 128) -> f32, + bias, store as OUT_DTYPE (lane-dense).
    out = jnp.dot(h, wh_ref[...], preferred_element_type=jnp.float32)
    out_ref[...] = (out + bh_ref[...]).astype(out_ref.dtype)


@jax.jit
def latent_classifier_fused(z, params):
    """z: (B, Z_DIM) f32. Returns the fused head slab (B, HEAD_PAD) in OUT_DTYPE.

    Layout: columns [0:3)=shape, [3:9)=scale, [9:49)=orient, [49:81)=posX,
    [81:113)=posY, [113:128) zero padding. Preferred API for hot loops."""
    w1, b1, w2, b2, wh, bh = params
    B = z.shape[0]
    tile_b, b_pad = _choose_tiling(B)
    grid = (b_pad // tile_b,)

    # Batch-only padding (no lane padding, no dtype cast of z).
    if b_pad != B:
        z = jnp.pad(z, ((0, b_pad - B), (0, 0)))

    weight_bytes = (Z_DIM * HIDDEN + HIDDEN + HIDDEN * HIDDEN + HIDDEN
                    + HIDDEN * HEAD_PAD + HEAD_PAD) * 4
    cost = pl.CostEstimate(
        flops=2 * b_pad * (Z_DIM * HIDDEN + HIDDEN * HIDDEN + HIDDEN * HEAD_PAD),
        transcendentals=0,
        bytes_accessed=b_pad * Z_DIM * 4
        + b_pad * HEAD_PAD * jnp.dtype(OUT_DTYPE).itemsize
        + weight_bytes,
    )

    resident = lambda i: (0, 0)   # weights/biases: same block every step -> VMEM-resident
    batched = lambda i: (i, 0)    # z / out: stream batch tiles

    out = pl.pallas_call(
        _latent_classifier_kernel,
        out_shape=jax.ShapeDtypeStruct((b_pad, HEAD_PAD), OUT_DTYPE),
        grid=grid,
        in_specs=[
            pl.BlockSpec((tile_b, Z_DIM), batched),       # z (f32, unpadded K=10)
            pl.BlockSpec((Z_DIM, HIDDEN), resident),      # w1 (f32)
            pl.BlockSpec((1, HIDDEN), resident),          # b1 (f32)
            pl.BlockSpec((HIDDEN, HIDDEN), resident),     # w2 (f32)
            pl.BlockSpec((1, HIDDEN), resident),          # b2 (f32)
            pl.BlockSpec((HIDDEN, HEAD_PAD), resident),   # wh (f32, heads concat + lane pad)
            pl.BlockSpec((1, HEAD_PAD), resident),        # bh (f32, lane pad)
        ],
        out_specs=pl.BlockSpec((tile_b, HEAD_PAD), batched),
        compiler_params=pltpu.CompilerParams(
            dimension_semantics=("parallel",),            # megacore on v7x; no-op v5e/v6e
        ),
        cost_estimate=cost,
    )(z, w1, b1, w2, b2, wh, bh)

    if b_pad != B:
        out = out[:B]
    return out


def split_heads(slab, dtype=jnp.float32):
    """Split the fused (B, >=113) slab into the 5 per-head arrays."""
    outs, off = [], 0
    for d in HEAD_DIMS:
        outs.append(slab[:, off:off + d].astype(dtype))
        off += d
    return outs


@jax.jit
def latent_classifier_forward(z, params):
    """Module-parity API: returns [shape, scale, orient, posX, posY] as f32 arrays.

    Values carry OUT_DTYPE (bf16) precision; use latent_classifier_fused for the
    zero-extra-copy hot path."""
    return split_heads(latent_classifier_fused(z, params))


def init_params(key):
    """Deterministic init mimicking nn.Linear's U(-1/sqrt(in), 1/sqrt(in)).

    Weights are stored as (in, out) so the forward is `x @ W + b`. The 5 head
    weights/biases are concatenated along the output axis and zero-padded to 128
    columns (lane-dense fused output). Everything stays f32 (weights are
    VMEM-resident, so bf16 would buy nothing on this mem-bound kernel)."""
    def linear(key, fan_in, fan_out):
        kw, kb = jax.random.split(key)
        bound = 1.0 / jnp.sqrt(fan_in)
        w = jax.random.uniform(kw, (fan_in, fan_out), jnp.float32, -bound, bound)
        b = jax.random.uniform(kb, (1, fan_out), jnp.float32, -bound, bound)
        return w, b

    keys = jax.random.split(key, 7)
    w1, b1 = linear(keys[0], Z_DIM, HIDDEN)
    w2, b2 = linear(keys[1], HIDDEN, HIDDEN)
    head_ws, head_bs = [], []
    for i, d in enumerate(HEAD_DIMS):
        w, b = linear(keys[2 + i], HIDDEN, d)
        head_ws.append(w)
        head_bs.append(b)
    wh = jnp.concatenate(head_ws, axis=1)   # (128, 113)
    bh = jnp.concatenate(head_bs, axis=1)   # (1, 113)
    wh = jnp.pad(wh, ((0, 0), (0, HEAD_PAD - HEAD_TOTAL)))
    bh = jnp.pad(bh, ((0, 0), (0, HEAD_PAD - HEAD_TOTAL)))
    return (w1, b1, w2, b2, wh, bh)


def reference_forward(z, params):
    """Pure-JAX f32 reference mirroring the PyTorch module."""
    w1, b1, w2, b2, wh, bh = params
    h = jnp.maximum(jnp.dot(z, w1) + b1, 0.0)
    h = jnp.maximum(jnp.dot(h, w2) + b2, 0.0)
    out = jnp.dot(h, wh) + bh
    return split_heads(out[:, :HEAD_TOTAL])


if __name__ == "__main__":
    key = jax.random.PRNGKey(0)
    k_params, k_small, k_large = jax.random.split(key, 3)
    params = init_params(k_params)

    # Small batch (single-step grid) and a larger batch (even multi-step grid,
    # megacore-shardable on v7x).
    for k_z, B in ((k_small, 8), (k_large, 384)):
        z = jax.random.normal(k_z, (B, Z_DIM), jnp.float32)
        outs = latent_classifier_forward(z, params)
        outs = [jax.block_until_ready(o) for o in outs]

        refs = reference_forward(z, params)
        for o, r, d in zip(outs, refs, HEAD_DIMS):
            assert o.shape == (B, d), (o.shape, d)
            # Tolerance absorbs the bf16 output store + MXU pass precision.
            assert jnp.allclose(o, r, atol=2e-2, rtol=2e-2), \
                float(jnp.max(jnp.abs(o - r)))

    print("KERNEL_OK")
</pallas_src>

<mosaic_0001>
module attributes {stable_mosaic.version = 11 : i64} {
  func.func @_latent_classifier_kernel(%arg0: i32, %arg1: memref<16x10xf32, #tpu.memory_space<vmem>>, %arg2: memref<10x128xf32, #tpu.memory_space<vmem>>, %arg3: memref<1x128xf32, #tpu.memory_space<vmem>>, %arg4: memref<128x128xf32, #tpu.memory_space<vmem>>, %arg5: memref<1x128xf32, #tpu.memory_space<vmem>>, %arg6: memref<128x128xf32, #tpu.memory_space<vmem>>, %arg7: memref<1x128xf32, #tpu.memory_space<vmem>>, %arg8: memref<16x128xbf16, #tpu.memory_space<vmem>>) attributes {dimension_semantics = [#tpu.dimension_semantics<parallel>], iteration_bounds = array<i64: 1>, scalar_prefetch = 0 : i64, scratch_operands = 0 : i64, tpu.core_type = #tpu.core_type<tc>, window_params = [{transform_indices = @transform_0, window_bounds = array<i64: 16, 10>}, {pipeline_mode = #tpu.pipeline_mode<synchronous>, transform_indices = @transform_1, window_bounds = array<i64: 10, 128>}, {pipeline_mode = #tpu.pipeline_mode<synchronous>, transform_indices = @transform_2, window_bounds = array<i64: 1, 128>}, {pipeline_mode = #tpu.pipeline_mode<synchronous>, transform_indices = @transform_3, window_bounds = array<i64: 128, 128>}, {pipeline_mode = #tpu.pipeline_mode<synchronous>, transform_indices = @transform_4, window_bounds = array<i64: 1, 128>}, {pipeline_mode = #tpu.pipeline_mode<synchronous>, transform_indices = @transform_5, window_bounds = array<i64: 128, 128>}, {pipeline_mode = #tpu.pipeline_mode<synchronous>, transform_indices = @transform_6, window_bounds = array<i64: 1, 128>}, {transform_indices = @transform_7, window_bounds = array<i64: 16, 128>}]} {
    %c0 = arith.constant 0 : index
    %c0_0 = arith.constant 0 : index
    %0 = vector.load %arg1[%c0, %c0_0] : memref<16x10xf32, #tpu.memory_space<vmem>>, vector<16x10xf32>
    %c0_1 = arith.constant 0 : index
    %c0_2 = arith.constant 0 : index
    %1 = vector.load %arg2[%c0_1, %c0_2] : memref<10x128xf32, #tpu.memory_space<vmem>>, vector<10x128xf32>
    %cst = arith.constant dense<0.000000e+00> : vector<16x128xf32>
    %2 = tpu.matmul %0, %1, %cst {dimension_numbers = #tpu.dot_dimension_numbers<[1], [0], [0], [1], [0, 0, 1, 1], [], []>} : vector<16x10xf32>, vector<10x128xf32>, vector<16x128xf32> -> vector<16x128xf32>
    %c0_3 = arith.constant 0 : index
    %c0_4 = arith.constant 0 : index
    %3 = vector.load %arg3[%c0_3, %c0_4] : memref<1x128xf32, #tpu.memory_space<vmem>>, vector<1x128xf32>
    %4 = vector.broadcast %3 : vector<1x128xf32> to vector<16x128xf32>
    %5 = arith.addf %2, %4 : vector<16x128xf32>
    %cst_5 = arith.constant 0.000000e+00 : f32
    %6 = vector.broadcast %cst_5 : f32 to vector<16x128xf32>
    %7 = arith.maximumf %5, %6 : vector<16x128xf32>
    %c0_6 = arith.constant 0 : index
    %c0_7 = arith.constant 0 : index
    %8 = vector.load %arg4[%c0_6, %c0_7] : memref<128x128xf32, #tpu.memory_space<vmem>>, vector<128x128xf32>
    %cst_8 = arith.constant dense<0.000000e+00> : vector<16x128xf32>
    %9 = tpu.matmul %7, %8, %cst_8 {dimension_numbers = #tpu.dot_dimension_numbers<[1], [0], [0], [1], [0, 0, 1, 1], [], []>} : vector<16x128xf32>, vector<128x128xf32>, vector<16x128xf32> -> vector<16x128xf32>
    %c0_9 = arith.constant 0 : index
    %c0_10 = arith.constant 0 : index
    %10 = vector.load %arg5[%c0_9, %c0_10] : memref<1x128xf32, #tpu.memory_space<vmem>>, vector<1x128xf32>
    %11 = vector.broadcast %10 : vector<1x128xf32> to vector<16x128xf32>
    %12 = arith.addf %9, %11 : vector<16x128xf32>
    %cst_11 = arith.constant 0.000000e+00 : f32
    %13 = vector.broadcast %cst_11 : f32 to vector<16x128xf32>
    %14 = arith.maximumf %12, %13 : vector<16x128xf32>
    %c0_12 = arith.constant 0 : index
    %c0_13 = arith.constant 0 : index
    %15 = vector.load %arg6[%c0_12, %c0_13] : memref<128x128xf32, #tpu.memory_space<vmem>>, vector<128x128xf32>
    %cst_14 = arith.constant dense<0.000000e+00> : vector<16x128xf32>
    %16 = tpu.matmul %14, %15, %cst_14 {dimension_numbers = #tpu.dot_dimension_numbers<[1], [0], [0], [1], [0, 0, 1, 1], [], []>} : vector<16x128xf32>, vector<128x128xf32>, vector<16x128xf32> -> vector<16x128xf32>
    %c0_15 = arith.constant 0 : index
    %c0_16 = arith.constant 0 : index
    %17 = vector.load %arg7[%c0_15, %c0_16] : memref<1x128xf32, #tpu.memory_space<vmem>>, vector<1x128xf32>
    %18 = vector.broadcast %17 : vector<1x128xf32> to vector<16x128xf32>
    %19 = arith.addf %16, %18 : vector<16x128xf32>
    %20 = arith.truncf %19 : vector<16x128xf32> to vector<16x128xbf16>
    %c0_17 = arith.constant 0 : index
    %c0_18 = arith.constant 0 : index
    %21 = vector.load %arg8[%c0_17, %c0_18] : memref<16x128xbf16, #tpu.memory_space<vmem>>, vector<16x128xbf16>
    tpu.vector_store %arg8[%c0_17, %c0_18], %20 {strides = array<i32>} : memref<16x128xbf16, #tpu.memory_space<vmem>>, vector<16x128xbf16>,
    return
  }
  func.func @transform_0(%arg0: i32) -> (i32, i32) {
    %c0_i32 = arith.constant 0 : i32
    %c0_i32_0 = arith.constant 0 : i32
    return %arg0, %c0_i32 : i32, i32
  }
  func.func @transform_1(%arg0: i32) -> (i32, i32) {
    %c0_i32 = arith.constant 0 : i32
    %c0_i32_0 = arith.constant 0 : i32
    %c0_i32_1 = arith.constant 0 : i32
    return %c0_i32, %c0_i32_0 : i32, i32
  }
  func.func @transform_2(%arg0: i32) -> (i32, i32) {
    %c0_i32 = arith.constant 0 : i32
    %c0_i32_0 = arith.constant 0 : i32
    %c0_i32_1 = arith.constant 0 : i32
    return %c0_i32, %c0_i32_0 : i32, i32
  }
  func.func @transform_3(%arg0: i32) -> (i32, i32) {
    %c0_i32 = arith.constant 0 : i32
    %c0_i32_0 = arith.constant 0 : i32
    %c0_i32_1 = arith.constant 0 : i32
    return %c0_i32, %c0_i32_0 : i32, i32
  }
  func.func @transform_4(%arg0: i32) -> (i32, i32) {
    %c0_i32 = arith.constant 0 : i32
    %c0_i32_0 = arith.constant 0 : i32
    %c0_i32_1 = arith.constant 0 : i32
    return %c0_i32, %c0_i32_0 : i32, i32
  }
  func.func @transform_5(%arg0: i32) -> (i32, i32) {
    %c0_i32 = arith.constant 0 : i32
    %c0_i32_0 = arith.constant 0 : i32
    %c0_i32_1 = arith.constant 0 : i32
    return %c0_i32, %c0_i32_0 : i32, i32
  }
  func.func @transform_6(%arg0: i32) -> (i32, i32) {
    %c0_i32 = arith.constant 0 : i32
    %c0_i32_0 = arith.constant 0 : i32
    %c0_i32_1 = arith.constant 0 : i32
    return %c0_i32, %c0_i32_0 : i32, i32
  }
  func.func @transform_7(%arg0: i32) -> (i32, i32) {
    %c0_i32 = arith.constant 0 : i32
    %c0_i32_0 = arith.constant 0 : i32
    return %arg0, %c0_i32 : i32, i32
  }
}

</mosaic_0001>

<llo_original>
// kernel: latent_classifier_fused.1
$region0: #{latent_classifier_fused.1}
  #allocation0 [shape = 'u32[]', space=smem, size = 0x4, offset = 0x4, fixed_abs, tag = 'smem constant byte address 0x4 - core index']
  #allocation1 [shape = 'u32[144,128]{1,0:T(1,128)}', space=vmem, size = 0x12000, scoped, tag = 'internal scratch']
  %s0 = inlined_call_operand.vmem [shape: f32[16,10], index: 0, kind: input, shape index: {}]
  %s1 = inlined_call_operand.vmem [shape: f32[10,128], index: 1, kind: input, shape index: {}]
  %s2 = inlined_call_operand.vmem [shape: f32[1,128], index: 2, kind: input, shape index: {}]
  %s3 = inlined_call_operand.hbm [shape: f32[128,128], index: 3, kind: input, shape index: {}]
  %s4 = inlined_call_operand.vmem [shape: f32[1,128], index: 4, kind: input, shape index: {}]
  %s5 = inlined_call_operand.hbm [shape: f32[128,128], index: 5, kind: input, shape index: {}]
  %s6 = inlined_call_operand.vmem [shape: f32[1,128], index: 6, kind: input, shape index: {}]
  %s7 = inlined_call_operand.vmem [shape: bf16[16,128], index: 7, kind: output, shape index: {}]
  %s8 = sld [smem:[#allocation0]]
  $region46: #{latent_classifier_fused.1} parent=0
    _
  %s10 = ssub.s32 1, %s8
  %s11 = scalar_select 0, %s10, %s8
  $region1: #{latent_classifier_fused.1} parent=0
    #allocation2 [shape = 'u8[65536]{0}', space=vmem, size = 0x10000, scoped, tag = 'input window, operand 3, single buffered']
    #allocation3 [shape = 's32[1]{0}', space=sflag, size = 0x4, scoped, tag = 'scoped memory for latent_classifier_fused.1']
    #allocation4 [shape = 'u8[65536]{0}', space=vmem, size = 0x10000, scoped, tag = 'input window, operand 5, single buffered']
    #allocation5 [shape = 's32[1]{0}', space=sflag, size = 0x4, scoped, tag = 'scoped memory for latent_classifier_fused.1']
    %12 = vsyncpa [#allocation3], 0
    %13 = vsyncpa [#allocation5], 0
    // Predicated region
    $region2: #{latent_classifier_fused.1} parent=1 // pred_check
      _
    $region3: #{latent_classifier_fused.1} parent=1 // pred_check_branch
      %15 = sbr.rel (0) target = $region5
    $region4: #{latent_classifier_fused.1} parent=1 // pred_region
      _
    $region5: #{latent_classifier_fused.1} parent=1 // pred_fallthru
      _
    // Predicated region
    $region6: #{latent_classifier_fused.1} parent=1 // pred_check
      _
    $region7: #{latent_classifier_fused.1} parent=1 // pred_check_branch
      %17 = sbr.rel (0) target = $region9
    $region8: #{latent_classifier_fused.1} parent=1 // pred_region
      _
    $region9: #{latent_classifier_fused.1} parent=1 // pred_fallthru
      _
    // Predicated region
    $region10: #{latent_classifier_fused.1} parent=1 // pred_check
      _
    $region11: #{latent_classifier_fused.1} parent=1 // pred_check_branch
      %19 = sbr.rel (0) target = $region13
    $region12: #{latent_classifier_fused.1} parent=1 // pred_region
      _
    $region13: #{latent_classifier_fused.1} parent=1 // pred_fallthru
      _
    // Predicated region
    $region14: #{latent_classifier_fused.1} parent=1 // pred_check
      _
    $region15: #{latent_classifier_fused.1} parent=1 // pred_check_branch
      %21 = sbr.rel (0) target = $region17
    $region16: #{latent_classifier_fused.1} parent=1 // pred_region
      %s23 = ssub.s32 2048, 2048
      %24 = vsyncadd [#allocation3], %s23
      %s25 = sshll.u32 [#allocation2], 4
      %s26 = int_to_ptr.vmem [resolvable:$true] %s25
      %31 = dma.hbm_to_vmem [thread:$0]  %s3, 2048, %s26, [#allocation3], 128, 128, 8
    $region17: #{latent_classifier_fused.1} parent=1 // pred_fallthru
      _
    // Predicated region
    $region18: #{latent_classifier_fused.1} parent=1 // pred_check
      _
    $region19: #{latent_classifier_fused.1} parent=1 // pred_check_branch
      %33 = sbr.rel (0) target = $region21
    $region20: #{latent_classifier_fused.1} parent=1 // pred_region
      _
    $region21: #{latent_classifier_fused.1} parent=1 // pred_fallthru
      _
    // Predicated region
    $region22: #{latent_classifier_fused.1} parent=1 // pred_check
      _
    $region23: #{latent_classifier_fused.1} parent=1 // pred_check_branch
      %35 = sbr.rel (0) target = $region25
    $region24: #{latent_classifier_fused.1} parent=1 // pred_region
      %s37 = ssub.s32 2048, 2048
      %38 = vsyncadd [#allocation5], %s37
      %s39 = sshll.u32 [#allocation4], 4
      %s40 = int_to_ptr.vmem [resolvable:$true] %s39
      %45 = dma.hbm_to_vmem [thread:$0]  %s5, 2048, %s40, [#allocation5], 128, 128, 8
    $region25: #{latent_classifier_fused.1} parent=1 // pred_fallthru
      _
    // Predicated region
    $region26: #{latent_classifier_fused.1} parent=1 // pred_check
      _
    $region27: #{latent_classifier_fused.1} parent=1 // pred_check_branch
      %47 = sbr.rel (0) target = $region29
    $region28: #{latent_classifier_fused.1} parent=1 // pred_region
      _
    $region29: #{latent_classifier_fused.1} parent=1 // pred_fallthru
      _
    // Predicated region
    $region30: #{latent_classifier_fused.1} parent=1 // pred_check
      _
    $region31: #{latent_classifier_fused.1} parent=1 // pred_check_branch
      %49 = sbr.rel (0) target = $region33
    $region32: #{latent_classifier_fused.1} parent=1 // pred_region
      %50 = dma.done [#allocation3], 2048
    $region33: #{latent_classifier_fused.1} parent=1 // pred_fallthru
      _
    // Predicated region
    $region34: #{latent_classifier_fused.1} parent=1 // pred_check
      _
    $region35: #{latent_classifier_fused.1} parent=1 // pred_check_branch
      %52 = sbr.rel (0) target = $region37
    $region36: #{latent_classifier_fused.1} parent=1 // pred_region
      %53 = dma.done [#allocation5], 2048
    $region37: #{latent_classifier_fused.1} parent=1 // pred_fallthru
      _
    %v54 = vld [vmem:[%s0] sm:$0xff]
    %v55 = vld [vmem:[%s0 + $0x8] sm:$0xff]
    %v56 = vld [vmem:[%s1] sm:$0xff]
    %v57 = vld [vmem:[%s1 + $0x8] sm:$0x3]
    %v58 = vld [vmem:[%s2] sm:$0x1]
    %v60 = vlaneseq
    %v61 = vshrl.u32 %v60, 7
    %v62 = vsub.s32 0, %v61
    %v63 = vrot.slane %v58, %v62
    %vm65 = vcmask 80896
    %v67 = vsel %vm65, %v54, 0
    %v70 = vsel %vm65, %v55, 0
    %vm72 = vcmask 1041408
    %v74 = vsel %vm72, %v57, 0
    %76 = vmatprep.subr.mxu0 0.0
    %77 = vmatpush1.msra.mxu0 0.0
    %78 = vmatprep.subr.mxu0 0.0
    %79 = vmatpush1.msra.mxu0 0.0
    %80 = vmatprep.subr.mxu0 0.0
    %81 = vmatpush1.msra.mxu0 0.0
    %82 = vmatprep.subr.mxu0 0.0
    %83 = vmatpush1.msra.mxu0 0.0
    %84 = vmatprep.subr.mxu0 0.0
    %85 = vmatpush1.msra.mxu0 0.0
    %86 = vmatprep.subr.mxu0 0.0
    %87 = vmatpush1.msra.mxu0 0.0
    %88 = vmatprep.subr.mxu0 0.0
    %89 = vmatpush1.msra.mxu0 0.0
    %90 = vmatprep.subr.mxu0 0.0
    %91 = vmatpush1.msra.mxu0 0.0
    %92 = vmatprep.subr.mxu0 0.0
    %93 = vmatpush1.msra.mxu0 0.0
    %94 = vmatprep.subr.mxu0 0.0
    %95 = vmatpush1.msra.mxu0 0.0
    %96 = vmatprep.subr.mxu0 0.0
    %97 = vmatpush1.msra.mxu0 0.0
    %98 = vmatprep.subr.mxu0 0.0
    %99 = vmatpush1.msra.mxu0 0.0
    %100 = vmatprep.subr.mxu0 0.0
    %101 = vmatpush1.msra.mxu0 0.0
    %102 = vmatprep.subr.mxu0 0.0
    %103 = vmatpush1.msra.mxu0 0.0
    %104 = vmatprep.subr.mxu0 0.0
    %105 = vmatpush1.msra.mxu0 %v74
    %106 = vmatprep.subr.mxu0 0.0
    %107 = vmatpush1.msra.mxu0 %v56
    %108 = vmatprep.subr.mxu0 0.0
    %109 = vmatpush2.msra.mxu0 0.0
    %110 = vmatprep.subr.mxu0 0.0
    %111 = vmatpush2.msra.mxu0 0.0
    %112 = vmatprep.subr.mxu0 0.0
    %113 = vmatpush2.msra.mxu0 0.0
    %114 = vmatprep.subr.mxu0 0.0
    %115 = vmatpush2.msra.mxu0 0.0
    %116 = vmatprep.subr.mxu0 0.0
    %117 = vmatpush2.msra.mxu0 0.0
    %118 = vmatprep.subr.mxu0 0.0
    %119 = vmatpush2.msra.mxu0 0.0
    %120 = vmatprep.subr.mxu0 0.0
    %121 = vmatpush2.msra.mxu0 0.0
    %122 = vmatprep.subr.mxu0 0.0
    %123 = vmatpush2.msra.mxu0 0.0
    %124 = vmatprep.subr.mxu0 0.0
    %125 = vmatpush2.msra.mxu0 0.0
    %126 = vmatprep.subr.mxu0 0.0
    %127 = vmatpush2.msra.mxu0 0.0
    %128 = vmatprep.subr.mxu0 0.0
    %129 = vmatpush2.msra.mxu0 0.0
    %130 = vmatprep.subr.mxu0 0.0
    %131 = vmatpush2.msra.mxu0 0.0
    %132 = vmatprep.subr.mxu0 0.0
    %133 = vmatpush2.msra.mxu0 0.0
    %134 = vmatprep.subr.mxu0 0.0
    %135 = vmatpush2.msra.mxu0 0.0
    %136 = vmatprep.subr.mxu0 0.0
    %137 = vmatpush2.msra.mxu0 0.0
    %138 = vmatprep.subr.mxu0 0.0
    %139 = vmatpush2.msra.mxu0 0.0
    %140 = vmatprep.mubr.f32.mxu0 0.0
    %141 = vmatmul.mubr.f32.gmra.mxu0 %v67
    %v142 = vpop.f32.mrf.mxu0
    %v143 = vadd.f32 %v63, %v142
    %v144 = vpop.f32.mrf.mxu0
    %145 = vmatprep.mubr.f32.mxu0 0.0
    %146 = vmatmul.mubr.f32.gmra.mxu0 %v70
    %v147 = vpop.f32.mrf.mxu0
    %v148 = vadd.f32 %v63, %v147
    %v149 = vpop.f32.mrf.mxu0
    %150 = vdwg.mxu0
    %v151 = vmax.f32 %v143, 0.0
    %v152 = vmax.f32 %v148, 0.0
    %v153 = vld [vmem:[#allocation2] sm:$0xff]
    %v154 = vld [vmem:[#allocation2 + $0x8] sm:$0xff]
    %v155 = vld [vmem:[#allocation2 + $0x10] sm:$0xff]
    %v156 = vld [vmem:[#allocation2 + $0x18] sm:$0xff]
    %v157 = vld [vmem:[#allocation2 + $0x20] sm:$0xff]
    %v158 = vld [vmem:[#allocation2 + $0x28] sm:$0xff]
    %v159 = vld [vmem:[#allocation2 + $0x30] sm:$0xff]
    %v160 = vld [vmem:[#allocation2 + $0x38] sm:$0xff]
    %v161 = vld [vmem:[#allocation2 + $0x40] sm:$0xff]
    %v162 = vld [vmem:[#allocation2 + $0x48] sm:$0xff]
    %v163 = vld [vmem:[#allocation2 + $0x50] sm:$0xff]
    %v164 = vld [vmem:[#allocation2 + $0x58] sm:$0xff]
    %v165 = vld [vmem:[#allocation2 + $0x60] sm:$0xff]
    %v166 = vld [vmem:[#allocation2 + $0x68] sm:$0xff]
    %v167 = vld [vmem:[#allocation2 + $0x70] sm:$0xff]
    %v168 = vld [vmem:[#allocation2 + $0x78] sm:$0xff]
    %v169 = vld [vmem:[%s4] sm:$0x1]
    %v171 = vlaneseq
    %v172 = vshrl.u32 %v171, 7
    %v173 = vsub.s32 0, %v172
    %v174 = vrot.slane %v169, %v173
    %176 = vmatprep.subr.mxu0 0.0
    %177 = vmatpush1.msra.mxu0 %v168
    %178 = vmatprep.subr.mxu0 0.0
    %179 = vmatpush1.msra.mxu0 %v167
    %180 = vmatprep.subr.mxu0 0.0
    %181 = vmatpush1.msra.mxu0 %v166
    %182 = vmatprep.subr.mxu0 0.0
    %183 = vmatpush1.msra.mxu0 %v165
    %184 = vmatprep.subr.mxu0 0.0
    %185 = vmatpush1.msra.mxu0 %v164
    %186 = vmatprep.subr.mxu0 0.0
    %187 = vmatpush1.msra.mxu0 %v163
    %188 = vmatprep.subr.mxu0 0.0
    %189 = vmatpush1.msra.mxu0 %v162
    %190 = vmatprep.subr.mxu0 0.0
    %191 = vmatpush1.msra.mxu0 %v161
    %192 = vmatprep.subr.mxu0 0.0
    %193 = vmatpush1.msra.mxu0 %v160
    %194 = vmatprep.subr.mxu0 0.0
    %195 = vmatpush1.msra.mxu0 %v159
    %196 = vmatprep.subr.mxu0 0.0
    %197 = vmatpush1.msra.mxu0 %v158
    %198 = vmatprep.subr.mxu0 0.0
    %199 = vmatpush1.msra.mxu0 %v157
    %200 = vmatprep.subr.mxu0 0.0
    %201 = vmatpush1.msra.mxu0 %v156
    %202 = vmatprep.subr.mxu0 0.0
    %203 = vmatpush1.msra.mxu0 %v155
    %204 = vmatprep.subr.mxu0 0.0
    %205 = vmatpush1.msra.mxu0 %v154
    %206 = vmatprep.subr.mxu0 0.0
    %207 = vmatpush1.msra.mxu0 %v153
    %208 = vmatprep.subr.mxu0 0.0
    %209 = vmatpush2.msra.mxu0 0.0
    %210 = vmatprep.subr.mxu0 0.0
    %211 = vmatpush2.msra.mxu0 0.0
    %212 = vmatprep.subr.mxu0 0.0
    %213 = vmatpush2.msra.mxu0 0.0
    %214 = vmatprep.subr.mxu0 0.0
    %215 = vmatpush2.msra.mxu0 0.0
    %216 = vmatprep.subr.mxu0 0.0
    %217 = vmatpush2.msra.mxu0 0.0
    %218 = vmatprep.subr.mxu0 0.0
    %219 = vmatpush2.msra.mxu0 0.0
    %220 = vmatprep.subr.mxu0 0.0
    %221 = vmatpush2.msra.mxu0 0.0
    %222 = vmatprep.subr.mxu0 0.0
    %223 = vmatpush2.msra.mxu0 0.0
    %224 = vmatprep.subr.mxu0 0.0
    %225 = vmatpush2.msra.mxu0 0.0
    %226 = vmatprep.subr.mxu0 0.0
    %227 = vmatpush2.msra.mxu0 0.0
    %228 = vmatprep.subr.mxu0 0.0
    %229 = vmatpush2.msra.mxu0 0.0
    %230 = vmatprep.subr.mxu0 0.0
    %231 = vmatpush2.msra.mxu0 0.0
    %232 = vmatprep.subr.mxu0 0.0
    %233 = vmatpush2.msra.mxu0 0.0
    %234 = vmatprep.subr.mxu0 0.0
    %235 = vmatpush2.msra.mxu0 0.0
    %236 = vmatprep.subr.mxu0 0.0
    %237 = vmatpush2.msra.mxu0 0.0
    %238 = vmatprep.subr.mxu0 0.0
    %239 = vmatpush2.msra.mxu0 0.0
    %240 = vmatprep.mubr.f32.mxu0 0.0
    %241 = vmatmul.mubr.f32.gmra.mxu0 %v151
    %v242 = vpop.f32.mrf.mxu0
    %v243 = vadd.f32 %v174, %v242
    %v244 = vpop.f32.mrf.mxu0
    %245 = vmatprep.mubr.f32.mxu0 0.0
    %246 = vmatmul.mubr.f32.gmra.mxu0 %v152
    %v247 = vpop.f32.mrf.mxu0
    %v248 = vadd.f32 %v174, %v247
    %v249 = vpop.f32.mrf.mxu0
    %250 = vdwg.mxu0
    %v251 = vmax.f32 %v243, 0.0
    %v252 = vmax.f32 %v248, 0.0
    %v253 = vld [vmem:[#allocation4] sm:$0xff]
    %v254 = vld [vmem:[#allocation4 + $0x8] sm:$0xff]
    %v255 = vld [vmem:[#allocation4 + $0x10] sm:$0xff]
    %v256 = vld [vmem:[#allocation4 + $0x18] sm:$0xff]
    %v257 = vld [vmem:[#allocation4 + $0x20] sm:$0xff]
    %v258 = vld [vmem:[#allocation4 + $0x28] sm:$0xff]
    %v259 = vld [vmem:[#allocation4 + $0x30] sm:$0xff]
    %v260 = vld [vmem:[#allocation4 + $0x38] sm:$0xff]
    %v261 = vld [vmem:[#allocation4 + $0x40] sm:$0xff]
    %v262 = vld [vmem:[#allocation4 + $0x48] sm:$0xff]
    %v263 = vld [vmem:[#allocation4 + $0x50] sm:$0xff]
    %v264 = vld [vmem:[#allocation4 + $0x58] sm:$0xff]
    %v265 = vld [vmem:[#allocation4 + $0x60] sm:$0xff]
    %v266 = vld [vmem:[#allocation4 + $0x68] sm:$0xff]
    %v267 = vld [vmem:[#allocation4 + $0x70] sm:$0xff]
    %v268 = vld [vmem:[#allocation4 + $0x78] sm:$0xff]
    %v269 = vld [vmem:[%s6] sm:$0x1]
    %v271 = vlaneseq
    %v272 = vshrl.u32 %v271, 7
    %v273 = vsub.s32 0, %v272
    %v274 = vrot.slane %v269, %v273
    %276 = vmatprep.subr.mxu0 0.0
    %277 = vmatpush1.msra.mxu0 %v268
    %278 = vmatprep.subr.mxu0 0.0
    %279 = vmatpush1.msra.mxu0 %v267
    %280 = vmatprep.subr.mxu0 0.0
    %281 = vmatpush1.msra.mxu0 %v266
    %282 = vmatprep.subr.mxu0 0.0
    %283 = vmatpush1.msra.mxu0 %v265
    %284 = vmatprep.subr.mxu0 0.0
    %285 = vmatpush1.msra.mxu0 %v264
    %286 = vmatprep.subr.mxu0 0.0
    %287 = vmatpush1.msra.mxu0 %v263
    %288 = vmatprep.subr.mxu0 0.0
    %289 = vmatpush1.msra.mxu0 %v262
    %290 = vmatprep.subr.mxu0 0.0
    %291 = vmatpush1.msra.mxu0 %v261
    %292 = vmatprep.subr.mxu0 0.0
    %293 = vmatpush1.msra.mxu0 %v260
    %294 = vmatprep.subr.mxu0 0.0
    %295 = vmatpush1.msra.mxu0 %v259
    %296 = vmatprep.subr.mxu0 0.0
    %297 = vmatpush1.msra.mxu0 %v258
    %298 = vmatprep.subr.mxu0 0.0
    %299 = vmatpush1.msra.mxu0 %v257
    %300 = vmatprep.subr.mxu0 0.0
    %301 = vmatpush1.msra.mxu0 %v256
    %302 = vmatprep.subr.mxu0 0.0
    %303 = vmatpush1.msra.mxu0 %v255
    %304 = vmatprep.subr.mxu0 0.0
    %305 = vmatpush1.msra.mxu0 %v254
    %306 = vmatprep.subr.mxu0 0.0
    %307 = vmatpush1.msra.mxu0 %v253
    %308 = vmatprep.subr.mxu0 0.0
    %309 = vmatpush2.msra.mxu0 0.0
    %310 = vmatprep.subr.mxu0 0.0
    %311 = vmatpush2.msra.mxu0 0.0
    %312 = vmatprep.subr.mxu0 0.0
    %313 = vmatpush2.msra.mxu0 0.0
    %314 = vmatprep.subr.mxu0 0.0
    %315 = vmatpush2.msra.mxu0 0.0
    %316 = vmatprep.subr.mxu0 0.0
    %317 = vmatpush2.msra.mxu0 0.0
    %318 = vmatprep.subr.mxu0 0.0
    %319 = vmatpush2.msra.mxu0 0.0
    %320 = vmatprep.subr.mxu0 0.0
    %321 = vmatpush2.msra.mxu0 0.0
    %322 = vmatprep.subr.mxu0 0.0
    %323 = vmatpush2.msra.mxu0 0.0
    %324 = vmatprep.subr.mxu0 0.0
    %325 = vmatpush2.msra.mxu0 0.0
    %326 = vmatprep.subr.mxu0 0.0
    %327 = vmatpush2.msra.mxu0 0.0
    %328 = vmatprep.subr.mxu0 0.0
    %329 = vmatpush2.msra.mxu0 0.0
    %330 = vmatprep.subr.mxu0 0.0
    %331 = vmatpush2.msra.mxu0 0.0
    %332 = vmatprep.subr.mxu0 0.0
    %333 = vmatpush2.msra.mxu0 0.0
    %334 = vmatprep.subr.mxu0 0.0
    %335 = vmatpush2.msra.mxu0 0.0
    %336 = vmatprep.subr.mxu0 0.0
    %337 = vmatpush2.msra.mxu0 0.0
    %338 = vmatprep.subr.mxu0 0.0
    %339 = vmatpush2.msra.mxu0 0.0
    %340 = vmatprep.mubr.f32.mxu0 0.0
    %341 = vmatmul.mubr.f32.gmra.mxu0 %v251
    %v342 = vpop.f32.mrf.mxu0
    %v343 = vadd.f32 %v274, %v342
    %v344 = vpop.f32.mrf.mxu0
    %345 = vmatprep.mubr.f32.mxu0 0.0
    %346 = vmatmul.mubr.f32.gmra.mxu0 %v252
    %v347 = vpop.f32.mrf.mxu0
    %v348 = vadd.f32 %v274, %v347
    %v349 = vpop.f32.mrf.mxu0
    %350 = vdwg.mxu0
    %v351 = vpack.c.bf16 %v348, %v343
    %v353 = vunpack.c.l.b16 %v351
    %v354 = vunpack.c.h.b16 %v351
    %v355 = vpack.c.b16 %v353, %v353
    %v356 = vpack.c.b16 %v354, %v354
    %359 = vst [vmem:[%s7] sm:$0xf] %v355
    %360 = vst [vmem:[%s7 + $0x4] sm:$0xf] %v356
    // Predicated region
    $region38: #{latent_classifier_fused.1} parent=1 // pred_check
      _
    $region39: #{latent_classifier_fused.1} parent=1 // pred_check_branch
      %362 = sbr.rel (0) target = $region41
    $region40: #{latent_classifier_fused.1} parent=1 // pred_region
      _
    $region41: #{latent_classifier_fused.1} parent=1 // pred_fallthru
      _
    // Predicated region
    $region42: #{latent_classifier_fused.1} parent=1 // pred_check
      _
    $region43: #{latent_classifier_fused.1} parent=1 // pred_check_branch
      %364 = sbr.rel (0) target = $region45
    $region44: #{latent_classifier_fused.1} parent=1 // pred_region
      _
    $region45: #{latent_classifier_fused.1} parent=1 // pred_fallthru
      _
    %365 = vsyncpa [#allocation3], 1
    %366 = vsyncpa [#allocation5], 1

</llo_original>
